<compile_context>
chip_gen: v7x
topology: tpu7x:2x2x1
jax: 0.10.0
libtpu: 0.0.40
codegen_flags: <defaults>
</compile_context>

<pallas_src>
import functools

import jax
import jax.numpy as jnp
from jax.experimental import pallas as pl
from jax.experimental.pallas import tpu as pltpu

EPS = 1e-5


def _cdiv(a, b):
    return -(-a // b)


def _round_down(v, m):
    return (v // m) * m


def _round_up(v, m):
    return -(-v // m) * m


def _sum_keepdims(v, axes):
    # Decomposed single-axis reductions (lane reduce on the last axis, cheap
    # cross-vreg adds on major axes).
    for a in sorted(axes, reverse=True):
        v = jnp.sum(v, axis=a, keepdims=True)
    return v


def _budgets():
    """(per-block x-tile byte budget, scoped-VMEM limit) sized to chip VMEM."""
    try:
        cap = pltpu.get_tpu_info().vmem_capacity_bytes
    except Exception:  # conservative default: assume v7x-sized (64 MiB) VMEM
        cap = 64 * 1024 * 1024
    if cap >= 100 * 1024 * 1024:  # v5e / v6e: 128 MiB physical VMEM
        return 8 * 1024 * 1024, 80 * 1024 * 1024
    return 4 * 1024 * 1024, 48 * 1024 * 1024  # v7x: 64 MiB physical VMEM


def _pick_c_tile(C, per_channel_bytes, budget, sub):
    """Channel tile for the single-pass kernel, or None if it cannot fit."""
    max_ct = budget // max(per_channel_bytes, 1)
    if max_ct >= C:
        c_tile = C
    else:
        c_tile = _round_down(int(max_ct), sub)
        if c_tile == 0:
            return None  # even `sub` channels of the full extent overflow VMEM
    # Megacore friendliness (v7x): prefer >= 2 blocks on the parallel axis.
    if c_tile == C and C >= 2 * sub:
        half = _round_up(_round_up(C, 2) // 2, sub)
        if half < C:
            c_tile = half
    return c_tile


# ---------------------------------------------------------------------------
# Single-pass kernel: each block holds the full reduction extent (all of N*L)
# for its channel tile.  Works on either the native (N, c_tile, L) block or
# the lane-dense (c_tile, N*L) block.
# ---------------------------------------------------------------------------
def _dyt_onepass_kernel(alpha_ref, x_ref, gamma_ref, beta_ref, o_ref, *, c_tile):
    if x_ref.ndim == 3:
        red_axes = (0, 2)
        nl = x_ref.shape[0] * x_ref.shape[2]
    else:
        red_axes = (1,)
        nl = x_ref.shape[1]

    # gamma/beta are untiled VMEM residents of shape (C_pad, 1); slice this
    # block's channel rows (full read when there is only one block).
    if gamma_ref.shape[0] == c_tile:
        gamma = gamma_ref[...]
        beta = beta_ref[...]
    else:
        start = pl.multiple_of(pl.program_id(0) * c_tile, c_tile)
        gamma = gamma_ref[pl.ds(start, c_tile), :]
        beta = beta_ref[pl.ds(start, c_tile), :]

    # Pass 1: per-channel mean.  x is re-read (and re-cast) per pass so no
    # full-tile f32 copy is pinned in VMEM for sub-32-bit inputs.
    mean = _sum_keepdims(x_ref[...].astype(jnp.float32), red_axes) / nl

    # Pass 2: unbiased, centered variance (two-pass form avoids sum-of-squares
    # cancellation).  N*L == 1 is guarded (torch yields NaN there).
    diff = x_ref[...].astype(jnp.float32) - mean
    var = _sum_keepdims(diff * diff, red_axes) / max(nl - 1, 1)
    std = jnp.sqrt(var) + EPS

    # Fold alpha and 1/std into one per-channel scale (per-channel divide
    # instead of an (N*L)-sized elementwise divide).
    scale = alpha_ref[0] / std

    # Pass 3: tanh (EUP slot) + affine (VPU).
    # TODO(synk): on v6e/v7x with bf16 inputs this pass could run in bf16 for
    # extra EUP/VPU throughput (not safe on v5e); kept in f32 for portability.
    y = jnp.tanh(x_ref[...].astype(jnp.float32) * scale)
    o_ref[...] = (gamma * y + beta).astype(o_ref.dtype)


# ---------------------------------------------------------------------------
# Chunked two-sweep fallback for reduction extents too large for one block.
# Sweep 1: running per-channel sum / sum-of-squares.  Sweep 2: normalize.
# ---------------------------------------------------------------------------
def _dyt_stats_kernel(x_ref, sum_ref, ssq_ref, *, l_tile, l_total):
    n = pl.program_id(1)
    j = pl.program_id(2)

    @pl.when((n == 0) & (j == 0))
    def _init():
        sum_ref[...] = jnp.zeros_like(sum_ref)
        ssq_ref[...] = jnp.zeros_like(ssq_ref)

    xf = x_ref[...].astype(jnp.float32)  # (1, ct, lt)
    col = jax.lax.broadcasted_iota(jnp.int32, xf.shape, 2)
    xm = jnp.where(j * l_tile + col < l_total, xf, 0.0)  # mask padded L columns
    sum_ref[...] += jnp.sum(xm, axis=2, keepdims=True)
    ssq_ref[...] += jnp.sum(xm * xm, axis=2, keepdims=True)


def _dyt_norm_kernel(x_ref, scale_ref, gamma_ref, beta_ref, o_ref):
    y = jnp.tanh(x_ref[...].astype(jnp.float32) * scale_ref[...])
    o_ref[...] = (gamma_ref[...] * y + beta_ref[...]).astype(o_ref.dtype)


def _dyt1d_chunked(x, alpha, gamma, beta, *, budget, vmem_limit, sub):
    N, C, L = x.shape
    itemsize = jnp.dtype(x.dtype).itemsize

    # Per-step x block is (1, ct, lt); keep it near budget/8 so the
    # double-buffered in/out copies plus f32 temporaries fit comfortably.
    target_elems = max((budget // 8) // itemsize, 8 * 128)
    ct = C if C <= sub else min(_round_down(C, sub), 16 * sub)
    if L <= 128:
        lt = L
    else:
        lt = max(128, min(_round_down(L, 128),
                          _round_down(max(target_elems // ct, 128), 128)))

    grid = (_cdiv(C, ct), N, _cdiv(L, lt))
    x_spec = pl.BlockSpec((1, ct, lt), lambda i, n, j: (n, i, j))
    stat_spec = pl.BlockSpec((1, ct, 1), lambda i, n, j: (0, i, 0))

    # Sweep 1: per-channel running sum / sum-of-squares (f32 accumulators
    # live in the resident output blocks across the reduction axes).
    s, q = pl.pallas_call(
        functools.partial(_dyt_stats_kernel, l_tile=lt, l_total=L),
        out_shape=(jax.ShapeDtypeStruct((1, C, 1), jnp.float32),
                   jax.ShapeDtypeStruct((1, C, 1), jnp.float32)),
        grid=grid,
        in_specs=[x_spec],
        out_specs=(stat_spec, stat_spec),
        compiler_params=pltpu.CompilerParams(
            dimension_semantics=("parallel", "arbitrary", "arbitrary"),
            vmem_limit_bytes=vmem_limit),
    )(x)

    nl = N * L
    mean = s / nl
    var = jnp.maximum((q - nl * mean * mean) / max(nl - 1, 1), 0.0)
    scale = jnp.asarray(alpha, jnp.float32) / (jnp.sqrt(var) + EPS)  # (1, C, 1)
    gamma3 = jnp.reshape(gamma, (1, C, 1)).astype(jnp.float32)
    beta3 = jnp.reshape(beta, (1, C, 1)).astype(jnp.float32)

    # Sweep 2: normalize + tanh + affine.
    return pl.pallas_call(
        _dyt_norm_kernel,
        out_shape=jax.ShapeDtypeStruct((N, C, L), x.dtype),
        grid=grid,
        in_specs=[x_spec, stat_spec, stat_spec, stat_spec],
        out_specs=x_spec,
        compiler_params=pltpu.CompilerParams(
            dimension_semantics=("parallel", "parallel", "parallel"),
            vmem_limit_bytes=vmem_limit),
    )(x, scale, gamma3, beta3)


# ---------------------------------------------------------------------------
# Public wrapper.
# ---------------------------------------------------------------------------
def dyt1d(x, alpha, gamma, beta, *, force_chunked=False):
    """DyT1d forward.  x: (N, C, L); alpha: scalar; gamma/beta: (1, C, 1)."""
    # TODO(synk): the module's 2-D (N, C) input branch (std over dim 0 only)
    # is not kernelized; only the 3-D (N, C, L) path is implemented.
    assert x.ndim == 3, "kernel implements the 3-D (N, C, L) path"
    N, C, L = x.shape
    itemsize = jnp.dtype(x.dtype).itemsize
    sub = max(8, 32 // itemsize)  # packed sublane multiple: 8 f32 / 16 bf16 / 32 int8
    budget, vmem_limit = _budgets()

    per_channel_bytes = N * L * itemsize
    c_tile = _pick_c_tile(C, per_channel_bytes, budget, sub)

    if force_chunked or c_tile is None:
        return _dyt1d_chunked(x, alpha, gamma, beta,
                              budget=budget, vmem_limit=vmem_limit, sub=sub)

    num_blocks = _cdiv(C, c_tile)
    c_pad = num_blocks * c_tile

    # Parameters: gamma/beta untiled (VMEM-resident, padded with zeros to the
    # channel grid so in-kernel slices are always in-bounds); alpha in SMEM.
    gamma2 = jnp.reshape(gamma, (C, 1)).astype(jnp.float32)
    beta2 = jnp.reshape(beta, (C, 1)).astype(jnp.float32)
    if c_pad > C:
        gamma2 = jnp.pad(gamma2, ((0, c_pad - C), (0, 0)))
        beta2 = jnp.pad(beta2, ((0, c_pad - C), (0, 0)))
    alpha_arr = jnp.asarray(alpha, dtype=jnp.float32).reshape((1,))

    kernel = functools.partial(_dyt_onepass_kernel, c_tile=c_tile)
    compiler_params = pltpu.CompilerParams(
        dimension_semantics=("parallel",), vmem_limit_bytes=vmem_limit)
    param_specs = [
        pl.BlockSpec(memory_space=pltpu.MemorySpace.SMEM),  # alpha (scalar)
        None,                                               # x spec (set below)
        pl.BlockSpec(memory_space=pltpu.MemorySpace.VMEM),  # gamma (resident)
        pl.BlockSpec(memory_space=pltpu.MemorySpace.VMEM),  # beta (resident)
    ]

    if L >= 128:
        # Native 3-D layout: no wrapper transposes (saves ~4 HBM passes).
        param_specs[1] = pl.BlockSpec((N, c_tile, L), lambda i: (0, i, 0))
        return pl.pallas_call(
            kernel,
            out_shape=jax.ShapeDtypeStruct((N, C, L), x.dtype),
            grid=(num_blocks,),
            in_specs=param_specs,
            out_specs=pl.BlockSpec((N, c_tile, L), lambda i: (0, i, 0)),
            compiler_params=compiler_params,
        )(alpha_arr, x, gamma2, beta2)

    # Small-L path: lane-dense (C, N*L) relayout so the reduction extent and
    # the output stores stay dense on the lane axis.
    nl = N * L
    x2 = jnp.transpose(x, (1, 0, 2)).reshape(C, nl)
    param_specs[1] = pl.BlockSpec((c_tile, nl), lambda i: (i, 0))
    out2 = pl.pallas_call(
        kernel,
        out_shape=jax.ShapeDtypeStruct((C, nl), x.dtype),
        grid=(num_blocks,),
        in_specs=param_specs,
        out_specs=pl.BlockSpec((c_tile, nl), lambda i: (i, 0)),
        compiler_params=compiler_params,
    )(alpha_arr, x2, gamma2, beta2)
    return jnp.transpose(out2.reshape(C, N, L), (1, 0, 2))


def dyt1d_ref(x, alpha, gamma, beta):
    """Pure-JAX reference mirroring the PyTorch forward (unbiased std)."""
    std = jnp.std(x, axis=(0, 2), keepdims=True, ddof=1) + EPS
    return gamma * jnp.tanh(alpha * (x / std)) + beta


if __name__ == "__main__":
    def _check(name, x, alpha, gamma, beta, tol, **kw):
        out = jax.block_until_ready(dyt1d(x, alpha, gamma, beta, **kw))
        ref = dyt1d_ref(x, alpha, gamma, beta)
        assert out.shape == x.shape, f"{name}: bad output shape"
        assert jnp.allclose(out, ref, atol=tol, rtol=tol), f"{name}: mismatch vs reference"

    alpha = jnp.float32(0.5)  # nn.Parameter(torch.tensor(0.5))

    # 1) Small shape (lane-dense relayout path, single block).
    N, C, L = 2, 4, 16
    x = jax.random.normal(jax.random.PRNGKey(0), (N, C, L), dtype=jnp.float32)
    gamma = jnp.ones((1, C, 1), jnp.float32)   # torch.ones(1, C, 1)
    beta = jnp.zeros((1, C, 1), jnp.float32)   # torch.zeros(1, C, 1)
    _check("relayout", x, alpha, gamma, beta, 1e-5)

    # 2) Lane-friendly L (native 3-D path; megacore split -> 2 channel blocks).
    N2, C2, L2 = 2, 16, 128
    x2 = jax.random.normal(jax.random.PRNGKey(1), (N2, C2, L2), dtype=jnp.float32)
    gamma2 = 0.5 + jax.random.uniform(jax.random.PRNGKey(2), (1, C2, 1), dtype=jnp.float32)
    beta2 = jax.random.normal(jax.random.PRNGKey(3), (1, C2, 1), dtype=jnp.float32)
    _check("native-3d", x2, alpha, gamma2, beta2, 1e-5)

    # 3) Relayout path with a partial channel block + untiled gamma/beta slicing.
    N3, C3, L3 = 2, 24, 16
    x3 = jax.random.normal(jax.random.PRNGKey(4), (N3, C3, L3), dtype=jnp.float32)
    gamma3 = 0.5 + jax.random.uniform(jax.random.PRNGKey(5), (1, C3, 1), dtype=jnp.float32)
    beta3 = jax.random.normal(jax.random.PRNGKey(6), (1, C3, 1), dtype=jnp.float32)
    _check("partial-block", x3, alpha, gamma3, beta3, 1e-5)

    # 4) Chunked two-sweep fallback (forced), with partial L and C chunks.
    N4, C4, L4 = 2, 12, 160
    x4 = jax.random.normal(jax.random.PRNGKey(7), (N4, C4, L4), dtype=jnp.float32)
    gamma4 = 0.5 + jax.random.uniform(jax.random.PRNGKey(8), (1, C4, 1), dtype=jnp.float32)
    beta4 = jax.random.normal(jax.random.PRNGKey(9), (1, C4, 1), dtype=jnp.float32)
    _check("chunked", x4, alpha, gamma4, beta4, 1e-4, force_chunked=True)

    print("KERNEL_OK")
</pallas_src>

<mosaic_0001>
module attributes {stable_mosaic.version = 11 : i64} {
  func.func @_dyt_onepass_kernel(%arg0: i32, %arg1: memref<1xf32, #tpu.memory_space<smem>>, %arg2: memref<4x32xf32, #tpu.memory_space<vmem>>, %arg3: memref<4x1xf32, #tpu.memory_space<vmem>>, %arg4: memref<4x1xf32, #tpu.memory_space<vmem>>, %arg5: memref<4x32xf32, #tpu.memory_space<vmem>>) attributes {dimension_semantics = [#tpu.dimension_semantics<parallel>], iteration_bounds = array<i64: 1>, scalar_prefetch = 0 : i64, scratch_operands = 0 : i64, tpu.core_type = #tpu.core_type<tc>, window_params = [{transform_indices = @transform_0, window_bounds = array<i64: 1>}, {transform_indices = @transform_1, window_bounds = array<i64: 4, 32>}, {pipeline_mode = #tpu.pipeline_mode<synchronous>, transform_indices = @transform_2, window_bounds = array<i64: 4, 1>}, {pipeline_mode = #tpu.pipeline_mode<synchronous>, transform_indices = @transform_3, window_bounds = array<i64: 4, 1>}, {transform_indices = @transform_4, window_bounds = array<i64: 4, 32>}]} {
    %c0 = arith.constant 0 : index
    %c0_0 = arith.constant 0 : index
    %0 = vector.load %arg3[%c0, %c0_0] : memref<4x1xf32, #tpu.memory_space<vmem>>, vector<4x1xf32>
    %c0_1 = arith.constant 0 : index
    %c0_2 = arith.constant 0 : index
    %1 = vector.load %arg4[%c0_1, %c0_2] : memref<4x1xf32, #tpu.memory_space<vmem>>, vector<4x1xf32>
    %c0_3 = arith.constant 0 : index
    %c0_4 = arith.constant 0 : index
    %2 = vector.load %arg2[%c0_3, %c0_4] : memref<4x32xf32, #tpu.memory_space<vmem>>, vector<4x32xf32>
    %cst = arith.constant dense<0.000000e+00> : vector<4xf32>
    %3 = vector.multi_reduction <add>, %2, %cst [1] : vector<4x32xf32> to vector<4xf32>
    %4 = vector.shape_cast %3 : vector<4xf32> to vector<4x1xf32>
    %cst_5 = arith.constant 3.200000e+01 : f32
    %5 = vector.broadcast %cst_5 : f32 to vector<4x1xf32>
    %6 = arith.divf %4, %5 : vector<4x1xf32>
    %c0_6 = arith.constant 0 : index
    %c0_7 = arith.constant 0 : index
    %7 = vector.load %arg2[%c0_6, %c0_7] : memref<4x32xf32, #tpu.memory_space<vmem>>, vector<4x32xf32>
    %8 = vector.broadcast %6 : vector<4x1xf32> to vector<4x32xf32>
    %9 = arith.subf %7, %8 : vector<4x32xf32>
    %10 = arith.mulf %9, %9 : vector<4x32xf32>
    %cst_8 = arith.constant dense<0.000000e+00> : vector<4xf32>
    %11 = vector.multi_reduction <add>, %10, %cst_8 [1] : vector<4x32xf32> to vector<4xf32>
    %12 = vector.shape_cast %11 : vector<4xf32> to vector<4x1xf32>
    %cst_9 = arith.constant 3.100000e+01 : f32
    %13 = vector.broadcast %cst_9 : f32 to vector<4x1xf32>
    %14 = arith.divf %12, %13 : vector<4x1xf32>
    %15 = math.sqrt %14 : vector<4x1xf32>
    %cst_10 = arith.constant 9.99999974E-6 : f32
    %16 = vector.broadcast %cst_10 : f32 to vector<4x1xf32>
    %17 = arith.addf %15, %16 : vector<4x1xf32>
    %c0_11 = arith.constant 0 : index
    %18 = memref.load %arg1[%c0_11] : memref<1xf32, #tpu.memory_space<smem>>
    %19 = vector.broadcast %18 : f32 to vector<4x1xf32>
    %20 = arith.divf %19, %17 : vector<4x1xf32>
    %c0_12 = arith.constant 0 : index
    %c0_13 = arith.constant 0 : index
    %21 = vector.load %arg2[%c0_12, %c0_13] : memref<4x32xf32, #tpu.memory_space<vmem>>, vector<4x32xf32>
    %22 = vector.broadcast %20 : vector<4x1xf32> to vector<4x32xf32>
    %23 = arith.mulf %21, %22 : vector<4x32xf32>
    %24 = math.tanh %23 : vector<4x32xf32>
    %25 = vector.broadcast %0 : vector<4x1xf32> to vector<4x32xf32>
    %26 = arith.mulf %25, %24 : vector<4x32xf32>
    %27 = vector.broadcast %1 : vector<4x1xf32> to vector<4x32xf32>
    %28 = arith.addf %26, %27 : vector<4x32xf32>
    %c0_14 = arith.constant 0 : index
    %c0_15 = arith.constant 0 : index
    %29 = vector.load %arg5[%c0_14, %c0_15] : memref<4x32xf32, #tpu.memory_space<vmem>>, vector<4x32xf32>
    tpu.vector_store %arg5[%c0_14, %c0_15], %28 {strides = array<i32>} : memref<4x32xf32, #tpu.memory_space<vmem>>, vector<4x32xf32>,
    return
  }
  func.func @transform_0(%arg0: i32) -> i32 {
    %c0_i32 = arith.constant 0 : i32
    %c0_i32_0 = arith.constant 0 : i32
    return %c0_i32 : i32
  }
  func.func @transform_1(%arg0: i32) -> (i32, i32) {
    %c0_i32 = arith.constant 0 : i32
    %c0_i32_0 = arith.constant 0 : i32
    return %arg0, %c0_i32 : i32, i32
  }
  func.func @transform_2(%arg0: i32) -> (i32, i32) {
    %c0_i32 = arith.constant 0 : i32
    %c0_i32_0 = arith.constant 0 : i32
    %c0_i32_1 = arith.constant 0 : i32
    return %c0_i32, %c0_i32_0 : i32, i32
  }
  func.func @transform_3(%arg0: i32) -> (i32, i32) {
    %c0_i32 = arith.constant 0 : i32
    %c0_i32_0 = arith.constant 0 : i32
    %c0_i32_1 = arith.constant 0 : i32
    return %c0_i32, %c0_i32_0 : i32, i32
  }
  func.func @transform_4(%arg0: i32) -> (i32, i32) {
    %c0_i32 = arith.constant 0 : i32
    %c0_i32_0 = arith.constant 0 : i32
    return %arg0, %c0_i32 : i32, i32
  }
}

</mosaic_0001>

<llo_original>
// kernel: tpu_custom_call.1
$region0: #{tpu_custom_call.1}
  #allocation0 [shape = 'u32[]', space=smem, size = 0x4, offset = 0x4, fixed_abs, tag = 'smem constant byte address 0x4 - core index']
  #allocation1 [shape = 'u32[144,128]{1,0:T(1,128)}', space=vmem, size = 0x12000, scoped, tag = 'internal scratch']
  #allocation2 [shape = 'f32[1]{0:T(128)S(6)}', space=smem, size = 0x200, scoped, tag = 'scoped memory for tpu_custom_call.1']
  %s0 = inlined_call_operand.<no memory space> [shape: f32[1], index: 0, kind: input, shape index: {}]
  %s1 = inlined_call_operand.vmem [shape: f32[4,32], index: 1, kind: input, shape index: {}]
  %s2 = inlined_call_operand.vmem [shape: f32[4,1], index: 2, kind: input, shape index: {}]
  %s3 = inlined_call_operand.vmem [shape: f32[4,1], index: 3, kind: input, shape index: {}]
  %s4 = inlined_call_operand.hbm [shape: f32[4,32], index: 4, kind: output, shape index: {}]
  %s5 = sld [smem:[#allocation0]]
  $region26: #{tpu_custom_call.1} parent=0
    _
  %s7 = ssub.s32 1, %s5
  %s8 = scalar_select 0, %s7, %s5
  %9 = sst [smem:[#allocation2]] %s0
  $region1: #{tpu_custom_call.1} parent=0
    #allocation3 [shape = 'u8[2048]{0}', space=vmem, size = 0x800, scoped, tag = 'output window, operand 0, single buffered']
    #allocation4 [shape = 's32[1]{0}', space=sflag, size = 0x4, scoped, tag = 'scoped memory for tpu_custom_call.1']
    %10 = vsyncpa [#allocation4], 0
    // Predicated region
    $region2: #{tpu_custom_call.1} parent=1 // pred_check
      _
    $region3: #{tpu_custom_call.1} parent=1 // pred_check_branch
      %12 = sbr.rel (0) target = $region5
    $region4: #{tpu_custom_call.1} parent=1 // pred_region
      _
    $region5: #{tpu_custom_call.1} parent=1 // pred_fallthru
      _
    // Predicated region
    $region6: #{tpu_custom_call.1} parent=1 // pred_check
      _
    $region7: #{tpu_custom_call.1} parent=1 // pred_check_branch
      %14 = sbr.rel (0) target = $region9
    $region8: #{tpu_custom_call.1} parent=1 // pred_region
      _
    $region9: #{tpu_custom_call.1} parent=1 // pred_fallthru
      _
    // Predicated region
    $region10: #{tpu_custom_call.1} parent=1 // pred_check
      _
    $region11: #{tpu_custom_call.1} parent=1 // pred_check_branch
      %16 = sbr.rel (0) target = $region13
    $region12: #{tpu_custom_call.1} parent=1 // pred_region
      _
    $region13: #{tpu_custom_call.1} parent=1 // pred_fallthru
      _
    // Predicated region
    $region14: #{tpu_custom_call.1} parent=1 // pred_check
      _
    $region15: #{tpu_custom_call.1} parent=1 // pred_check_branch
      %18 = sbr.rel (0) target = $region17
    $region16: #{tpu_custom_call.1} parent=1 // pred_region
      _
    $region17: #{tpu_custom_call.1} parent=1 // pred_fallthru
      _
    %v19 = vld [vmem:[%s2] sm:$0xf]
    %v20 = vld [vmem:[%s3] sm:$0xf]
    %v21 = vld [vmem:[%s1] sm:$0xf]
    %vm22 = vcmask 257024
    %v23 = vsel %vm22, %v21, 0.0
    %24 = vadd.xlane.f32.xlu0 %v23
    %v25 = vpop.xlane.xlu0 %24
    %v26 = vrcp.pop 32.0
    %v27 = vmul.f32 %v25, %v26
    %v28 = vsub.f32 %v21, %v27
    %v29 = vmul.f32 %v28, %v28
    %v30 = vsel %vm22, %v29, 0.0
    %31 = vadd.xlane.f32.xlu0 %v30
    %v32 = vpop.xlane.xlu0 %31
    %v33 = vrcp.pop 31.0
    %v34 = vmul.f32 %v32, %v33
    %v35 = vrsqrt.pop %v34
    %v36 = vmul.f32 %v34, %v35
    %vm37 = vcmp.eq.f32.partialorder %v34, inf
    %v38 = vsel %vm37, %v34, %v36
    %vm39 = vcmp.eq.f32.partialorder %v34, 0.0
    %v40 = vand.u32 %v34, 2147483648
    %v41 = vsel %vm39, %v40, %v38
    %v42 = vadd.f32 %v41, 1e-05
    %s43 = sld [smem:[#allocation2]]
    %v44 = vstv %s43
    %v45 = vrcp.pop %v42
    %v46 = vmul.f32 %v44, %v45
    %v47 = vmul.f32 %v21, %v46
    %v48 = vtanh.pop %v47
    %50 = vset.pattern.permute.xlu0 0
    %51 = vperm.xlu0 %50, %v19
    %v52 = vpop.permute.xlu0 %51
    %v54 = vmul.f32 %v52, %v48
    %56 = vset.pattern.permute.xlu0 0
    %57 = vperm.xlu0 %56, %v20
    %v58 = vpop.permute.xlu0 %57
    %v60 = vadd.f32 %v54, %v58
    %61 = vst.msk [vmem:[#allocation3] sm:$0xf] %vm22, %v60
    // Predicated region
    $region18: #{tpu_custom_call.1} parent=1 // pred_check
      _
    $region19: #{tpu_custom_call.1} parent=1 // pred_check_branch
      %63 = sbr.rel (0) target = $region21
    $region20: #{tpu_custom_call.1} parent=1 // pred_region
      %s65 = ssub.s32 64, 64
      %66 = vsyncadd [#allocation4], %s65
      %s68 = sshll.u32 [#allocation3], 4
      %s69 = int_to_ptr.vmem [resolvable:$true] %s68
      %71 = dma.vmem_to_hbm [thread:$0]  %s69, 64, %s4, [#allocation4]
    $region21: #{tpu_custom_call.1} parent=1 // pred_fallthru
      _
    // Predicated region
    $region22: #{tpu_custom_call.1} parent=1 // pred_check
      _
    $region23: #{tpu_custom_call.1} parent=1 // pred_check_branch
      %73 = sbr.rel (0) target = $region25
    $region24: #{tpu_custom_call.1} parent=1 // pred_region
      %74 = dma.done [#allocation4], 64
    $region25: #{tpu_custom_call.1} parent=1 // pred_fallthru
      _
    %75 = vsyncpa [#allocation4], 1

</llo_original>
